<compile_context>
chip_gen: v6e
topology: v6e:2x2x1
jax: 0.10.0
libtpu: 0.0.40
codegen_flags: <defaults>
</compile_context>

<pallas_src>
import functools

import jax
import jax.numpy as jnp
from jax import lax
from jax.experimental import pallas as pl
from jax.experimental.pallas import tpu as pltpu

LEAKY_SLOPE = 0.01      # nn.LeakyReLU() default negative_slope
BN_EPS = 1e-5           # nn.BatchNorm1d default eps
LANE = 128              # TPU lane width — all feature dims padded to a multiple of this
NEG_MASK = -1.0e30      # head-bias padding: padded logits contribute exp(..)=0 to softmax


def _round_up(n, m):
    return ((n + m - 1) // m) * m


# ----------------------------- fused Pallas kernel -----------------------------

def _block_math(h, w_bf16, b, gamma, beta):
    """Linear -> LeakyReLU -> BatchNorm1d (training-mode batch stats). Pure jnp/lax,
    usable both inside the Pallas kernel and in the XLA reference."""
    z = jnp.dot(h.astype(jnp.bfloat16), w_bf16,
                preferred_element_type=jnp.float32) + b
    z = jnp.where(z >= 0, z, LEAKY_SLOPE * z)
    mean = jnp.mean(z, axis=0, keepdims=True)
    var = jnp.mean(jnp.square(z - mean), axis=0, keepdims=True)
    return (z - mean) * lax.rsqrt(var + BN_EPS) * gamma + beta


def _fused_mlp_kernel(x_ref, w0_ref, wrest_ref, vecs_ref, o_ref):
    """Entire ImageClassifier forward in one kernel invocation.

    x_ref:     (B, IN_PAD)         f32
    w0_ref:    (IN_PAD, H_PAD)     bf16  first block weight (pre-transposed, zero-padded)
    wrest_ref: (NB, H_PAD, H_PAD)  bf16  blocks 1..NB-1 weights + head weight
    vecs_ref:  (3*NB + 1, H_PAD)   f32   per-block [bias, gamma, beta] rows + head-bias row
    o_ref:     (B, H_PAD)          f32   lane-dense log-softmax (sliced to output_size outside)
    """
    nb = (vecs_ref.shape[0] - 1) // 3          # number of hidden blocks (static)
    vecs = vecs_ref[...]                       # tiny packed vector table — single load

    # Block 0 consumes the (wider) input features.
    h = _block_math(x_ref[...], w0_ref[...],
                    vecs[0:1, :], vecs[1:2, :], vecs[2:3, :])

    # Blocks 1 .. NB-1, statically unrolled; activations never leave the core.
    for i in range(1, nb):
        h = _block_math(h, wrest_ref[i - 1],
                        vecs[3 * i:3 * i + 1, :],
                        vecs[3 * i + 1:3 * i + 2, :],
                        vecs[3 * i + 2:3 * i + 3, :])

    # Head: Linear -> LogSoftmax. Padded lanes carry a -1e30 bias, so exp() of them is 0.
    logits = jnp.dot(h.astype(jnp.bfloat16), wrest_ref[nb - 1],
                     preferred_element_type=jnp.float32) + vecs[3 * nb:3 * nb + 1, :]
    m = jnp.max(logits, axis=-1, keepdims=True)
    z = logits - m
    lse = jnp.log(jnp.sum(jnp.exp(z), axis=-1, keepdims=True))
    o_ref[...] = z - lse


# ------------------------------ pallas_call glue ----------------------------

def _full_spec(shape):
    # Whole-array block, single grid step.
    return pl.BlockSpec(shape, lambda i: (0,) * len(shape))


@functools.partial(jax.jit, static_argnames=("output_size",))
def image_classifier_forward(x, w0, wrest, vecs, *, output_size):
    B = x.shape[0]
    in_pad, h_pad = w0.shape
    nb = wrest.shape[0]

    if x.shape[1] != in_pad:                       # zero-pad input features to lane multiple
        x = jnp.pad(x, ((0, 0), (0, in_pad - x.shape[1])))

    # Advisory cost so XLA doesn't serialize unrelated work behind an unknown-cost call.
    flops = 2 * B * (in_pad * h_pad + nb * h_pad * h_pad)
    transcendentals = B * h_pad + B + nb * h_pad        # exp + log + rsqrt (approx.)
    bytes_accessed = (x.size * 4 + w0.size * 2 + wrest.size * 2
                      + vecs.size * 4 + B * h_pad * 4)

    out_pad = pl.pallas_call(
        _fused_mlp_kernel,
        grid=(1,),
        in_specs=[_full_spec(x.shape), _full_spec(w0.shape),
                  _full_spec(wrest.shape), _full_spec(vecs.shape)],
        out_specs=_full_spec((B, h_pad)),
        out_shape=jax.ShapeDtypeStruct((B, h_pad), jnp.float32),
        compiler_params=pltpu.CompilerParams(dimension_semantics=("arbitrary",)),
        cost_estimate=pl.CostEstimate(flops=flops,
                                      transcendentals=transcendentals,
                                      bytes_accessed=bytes_accessed),
    )(x, w0, wrest, vecs)
    return out_pad[:, :output_size]


# ------------------------------ parameter packing ----------------------------

def init_params(key, input_size, output_size, hidden_sizes):
    """Torch-default-like init (Linear U(±1/sqrt(fan_in)), BN weight=1 / bias=0),
    zero-padded to lane multiples and packed for the fused kernel."""
    nb = len(hidden_sizes)
    in_pad = _round_up(input_size, LANE)
    h_pad = _round_up(max(hidden_sizes + [output_size]), LANE)

    def linear(k, fan_in, fan_out):
        kw, kb = jax.random.split(k)
        bound = 1.0 / float(fan_in) ** 0.5
        w = jax.random.uniform(kw, (fan_out, fan_in), jnp.float32, -bound, bound)
        b = jax.random.uniform(kb, (fan_out,), jnp.float32, -bound, bound)
        return w, b

    keys = jax.random.split(key, nb + 1)

    # Block 0 weight: (in_pad, h_pad)
    w, b0 = linear(keys[0], input_size, hidden_sizes[0])
    w0 = jnp.zeros((in_pad, h_pad), jnp.float32).at[:input_size, :hidden_sizes[0]].set(w.T)

    # Blocks 1..nb-1 + head, stacked: (nb, h_pad, h_pad); packed vector table (3*nb+1, h_pad)
    wrest = jnp.zeros((nb, h_pad, h_pad), jnp.float32)
    vecs = jnp.zeros((3 * nb + 1, h_pad), jnp.float32)
    vecs = vecs.at[0, :hidden_sizes[0]].set(b0)
    vecs = vecs.at[1, :hidden_sizes[0]].set(1.0)       # BN gamma (beta row stays zero)

    last = hidden_sizes[0]
    for i in range(1, nb):
        w, b = linear(keys[i], last, hidden_sizes[i])
        wrest = wrest.at[i - 1, :last, :hidden_sizes[i]].set(w.T)
        vecs = vecs.at[3 * i, :hidden_sizes[i]].set(b)
        vecs = vecs.at[3 * i + 1, :hidden_sizes[i]].set(1.0)
        last = hidden_sizes[i]

    # Head
    w, b = linear(keys[nb], last, output_size)
    wrest = wrest.at[nb - 1, :last, :output_size].set(w.T)
    head_bias = jnp.full((h_pad,), NEG_MASK, jnp.float32).at[:output_size].set(b)
    vecs = vecs.at[3 * nb].set(head_bias)

    return {"w0": w0.astype(jnp.bfloat16),
            "wrest": wrest.astype(jnp.bfloat16),
            "vecs": vecs}


# ------------------------------ pure-JAX reference ---------------------------

def _reference_forward(x, params, output_size):
    """XLA reference mirroring the kernel math exactly (same bf16 matmuls, same BN)."""
    w0, wrest, vecs = params["w0"], params["wrest"], params["vecs"]
    nb = wrest.shape[0]
    in_pad = w0.shape[0]
    if x.shape[1] != in_pad:
        x = jnp.pad(x, ((0, 0), (0, in_pad - x.shape[1])))
    h = _block_math(x, w0, vecs[0:1], vecs[1:2], vecs[2:3])
    for i in range(1, nb):
        h = _block_math(h, wrest[i - 1],
                        vecs[3 * i:3 * i + 1], vecs[3 * i + 1:3 * i + 2],
                        vecs[3 * i + 2:3 * i + 3])
    logits = jnp.dot(h.astype(jnp.bfloat16), wrest[nb - 1],
                     preferred_element_type=jnp.float32) + vecs[3 * nb:3 * nb + 1]
    m = jnp.max(logits, axis=-1, keepdims=True)
    z = logits - m
    lse = jnp.log(jnp.sum(jnp.exp(z), axis=-1, keepdims=True))
    return (z - lse)[:, :output_size]


# ----------------------------------- main ------------------------------------

if __name__ == "__main__":
    # Small classifier config: flattened 16x16 "image" -> 10 classes.
    B = 8
    INPUT_SIZE = 256               # 16 * 16 flattened image
    HIDDEN_SIZES = [128, 96, 64, 48, 32]
    OUTPUT_SIZE = 10

    key = jax.random.PRNGKey(0)
    key, kx = jax.random.split(key)
    x = jax.random.normal(kx, (B, INPUT_SIZE), jnp.float32)

    params = init_params(key, INPUT_SIZE, OUTPUT_SIZE, HIDDEN_SIZES)

    out = image_classifier_forward(x, params["w0"], params["wrest"], params["vecs"],
                                   output_size=OUTPUT_SIZE)
    out = jax.block_until_ready(out)

    ref = _reference_forward(x, params, OUTPUT_SIZE)
    assert out.shape == (B, OUTPUT_SIZE)
    assert jnp.allclose(out, ref, atol=2e-4, rtol=2e-4), "Pallas output mismatch vs reference"
    # log-softmax rows should exponentiate-sum to ~1
    assert jnp.allclose(jnp.sum(jnp.exp(out), axis=-1), 1.0, atol=1e-4)

    print("KERNEL_OK")
</pallas_src>

<mosaic_0001>
module attributes {stable_mosaic.version = 11 : i64} {
  func.func @_fused_mlp_kernel(%arg0: i32, %arg1: memref<8x256xf32, #tpu.memory_space<vmem>>, %arg2: memref<256x128xbf16, #tpu.memory_space<vmem>>, %arg3: memref<5x128x128xbf16, #tpu.memory_space<vmem>>, %arg4: memref<16x128xf32, #tpu.memory_space<vmem>>, %arg5: memref<8x128xf32, #tpu.memory_space<vmem>>) attributes {dimension_semantics = [#tpu.dimension_semantics<arbitrary>], iteration_bounds = array<i64: 1>, scalar_prefetch = 0 : i64, scratch_operands = 0 : i64, tpu.core_type = #tpu.core_type<tc>, window_params = [{pipeline_mode = #tpu.pipeline_mode<synchronous>, transform_indices = @transform_0, window_bounds = array<i64: 8, 256>}, {pipeline_mode = #tpu.pipeline_mode<synchronous>, transform_indices = @transform_1, window_bounds = array<i64: 256, 128>}, {pipeline_mode = #tpu.pipeline_mode<synchronous>, transform_indices = @transform_2, window_bounds = array<i64: 5, 128, 128>}, {pipeline_mode = #tpu.pipeline_mode<synchronous>, transform_indices = @transform_3, window_bounds = array<i64: 16, 128>}, {pipeline_mode = #tpu.pipeline_mode<synchronous>, transform_indices = @transform_4, window_bounds = array<i64: 8, 128>}]} {
    %c0 = arith.constant 0 : index
    %c0_0 = arith.constant 0 : index
    %0 = vector.load %arg4[%c0, %c0_0] : memref<16x128xf32, #tpu.memory_space<vmem>>, vector<16x128xf32>
    %c0_1 = arith.constant 0 : index
    %c0_2 = arith.constant 0 : index
    %1 = vector.load %arg1[%c0_1, %c0_2] : memref<8x256xf32, #tpu.memory_space<vmem>>, vector<8x256xf32>
    %c0_3 = arith.constant 0 : index
    %c0_4 = arith.constant 0 : index
    %2 = vector.load %arg2[%c0_3, %c0_4] : memref<256x128xbf16, #tpu.memory_space<vmem>>, vector<256x128xbf16>
    %3 = vector.extract_strided_slice %0 {offsets = [0, 0], sizes = [1, 128], strides = [1, 1]} : vector<16x128xf32> to vector<1x128xf32>
    %4 = vector.extract_strided_slice %0 {offsets = [1, 0], sizes = [1, 128], strides = [1, 1]} : vector<16x128xf32> to vector<1x128xf32>
    %5 = vector.extract_strided_slice %0 {offsets = [2, 0], sizes = [1, 128], strides = [1, 1]} : vector<16x128xf32> to vector<1x128xf32>
    %6 = arith.truncf %1 : vector<8x256xf32> to vector<8x256xbf16>
    %cst = arith.constant dense<0.000000e+00> : vector<8x128xf32>
    %7 = tpu.matmul %6, %2, %cst {dimension_numbers = #tpu.dot_dimension_numbers<[1], [0], [0], [1], [0, 0, 1, 1], [], []>} : vector<8x256xbf16>, vector<256x128xbf16>, vector<8x128xf32> -> vector<8x128xf32>
    %8 = vector.broadcast %3 : vector<1x128xf32> to vector<8x128xf32>
    %9 = arith.addf %7, %8 : vector<8x128xf32>
    %cst_5 = arith.constant 0.000000e+00 : f32
    %10 = vector.broadcast %cst_5 : f32 to vector<8x128xf32>
    %11 = arith.cmpf oge, %9, %10 : vector<8x128xf32>
    %cst_6 = arith.constant 0.00999999977 : f32
    %12 = vector.broadcast %cst_6 : f32 to vector<8x128xf32>
    %13 = arith.mulf %12, %9 : vector<8x128xf32>
    %14 = arith.select %11, %9, %13 : vector<8x128xi1>, vector<8x128xf32>
    %cst_7 = arith.constant dense<0.000000e+00> : vector<128xf32>
    %15 = vector.multi_reduction <add>, %14, %cst_7 [0] : vector<8x128xf32> to vector<128xf32>
    %16 = vector.shape_cast %15 : vector<128xf32> to vector<1x128xf32>
    %cst_8 = arith.constant 8.000000e+00 : f32
    %17 = vector.broadcast %cst_8 : f32 to vector<1x128xf32>
    %18 = arith.divf %16, %17 : vector<1x128xf32>
    %19 = vector.broadcast %18 : vector<1x128xf32> to vector<8x128xf32>
    %20 = arith.subf %14, %19 : vector<8x128xf32>
    %21 = arith.mulf %20, %20 : vector<8x128xf32>
    %cst_9 = arith.constant dense<0.000000e+00> : vector<128xf32>
    %22 = vector.multi_reduction <add>, %21, %cst_9 [0] : vector<8x128xf32> to vector<128xf32>
    %23 = vector.shape_cast %22 : vector<128xf32> to vector<1x128xf32>
    %cst_10 = arith.constant 8.000000e+00 : f32
    %24 = vector.broadcast %cst_10 : f32 to vector<1x128xf32>
    %25 = arith.divf %23, %24 : vector<1x128xf32>
    %26 = vector.broadcast %18 : vector<1x128xf32> to vector<8x128xf32>
    %27 = arith.subf %14, %26 : vector<8x128xf32>
    %cst_11 = arith.constant 9.99999974E-6 : f32
    %28 = vector.broadcast %cst_11 : f32 to vector<1x128xf32>
    %29 = arith.addf %25, %28 : vector<1x128xf32>
    %30 = math.rsqrt %29 : vector<1x128xf32>
    %31 = vector.broadcast %30 : vector<1x128xf32> to vector<8x128xf32>
    %32 = arith.mulf %27, %31 : vector<8x128xf32>
    %33 = vector.broadcast %4 : vector<1x128xf32> to vector<8x128xf32>
    %34 = arith.mulf %32, %33 : vector<8x128xf32>
    %35 = vector.broadcast %5 : vector<1x128xf32> to vector<8x128xf32>
    %36 = arith.addf %34, %35 : vector<8x128xf32>
    %c0_12 = arith.constant 0 : index
    %c0_13 = arith.constant 0 : index
    %c0_14 = arith.constant 0 : index
    %37 = vector.load %arg3[%c0_12, %c0_13, %c0_14] : memref<5x128x128xbf16, #tpu.memory_space<vmem>>, vector<1x128x128xbf16>
    %38 = vector.shape_cast %37 : vector<1x128x128xbf16> to vector<128x128xbf16>
    %39 = vector.extract_strided_slice %0 {offsets = [3, 0], sizes = [1, 128], strides = [1, 1]} : vector<16x128xf32> to vector<1x128xf32>
    %40 = vector.extract_strided_slice %0 {offsets = [4, 0], sizes = [1, 128], strides = [1, 1]} : vector<16x128xf32> to vector<1x128xf32>
    %41 = vector.extract_strided_slice %0 {offsets = [5, 0], sizes = [1, 128], strides = [1, 1]} : vector<16x128xf32> to vector<1x128xf32>
    %42 = arith.truncf %36 : vector<8x128xf32> to vector<8x128xbf16>
    %cst_15 = arith.constant dense<0.000000e+00> : vector<8x128xf32>
    %43 = tpu.matmul %42, %38, %cst_15 {dimension_numbers = #tpu.dot_dimension_numbers<[1], [0], [0], [1], [0, 0, 1, 1], [], []>} : vector<8x128xbf16>, vector<128x128xbf16>, vector<8x128xf32> -> vector<8x128xf32>
    %44 = vector.broadcast %39 : vector<1x128xf32> to vector<8x128xf32>
    %45 = arith.addf %43, %44 : vector<8x128xf32>
    %cst_16 = arith.constant 0.000000e+00 : f32
    %46 = vector.broadcast %cst_16 : f32 to vector<8x128xf32>
    %47 = arith.cmpf oge, %45, %46 : vector<8x128xf32>
    %cst_17 = arith.constant 0.00999999977 : f32
    %48 = vector.broadcast %cst_17 : f32 to vector<8x128xf32>
    %49 = arith.mulf %48, %45 : vector<8x128xf32>
    %50 = arith.select %47, %45, %49 : vector<8x128xi1>, vector<8x128xf32>
    %cst_18 = arith.constant dense<0.000000e+00> : vector<128xf32>
    %51 = vector.multi_reduction <add>, %50, %cst_18 [0] : vector<8x128xf32> to vector<128xf32>
    %52 = vector.shape_cast %51 : vector<128xf32> to vector<1x128xf32>
    %cst_19 = arith.constant 8.000000e+00 : f32
    %53 = vector.broadcast %cst_19 : f32 to vector<1x128xf32>
    %54 = arith.divf %52, %53 : vector<1x128xf32>
    %55 = vector.broadcast %54 : vector<1x128xf32> to vector<8x128xf32>
    %56 = arith.subf %50, %55 : vector<8x128xf32>
    %57 = arith.mulf %56, %56 : vector<8x128xf32>
    %cst_20 = arith.constant dense<0.000000e+00> : vector<128xf32>
    %58 = vector.multi_reduction <add>, %57, %cst_20 [0] : vector<8x128xf32> to vector<128xf32>
    %59 = vector.shape_cast %58 : vector<128xf32> to vector<1x128xf32>
    %cst_21 = arith.constant 8.000000e+00 : f32
    %60 = vector.broadcast %cst_21 : f32 to vector<1x128xf32>
    %61 = arith.divf %59, %60 : vector<1x128xf32>
    %62 = vector.broadcast %54 : vector<1x128xf32> to vector<8x128xf32>
    %63 = arith.subf %50, %62 : vector<8x128xf32>
    %cst_22 = arith.constant 9.99999974E-6 : f32
    %64 = vector.broadcast %cst_22 : f32 to vector<1x128xf32>
    %65 = arith.addf %61, %64 : vector<1x128xf32>
    %66 = math.rsqrt %65 : vector<1x128xf32>
    %67 = vector.broadcast %66 : vector<1x128xf32> to vector<8x128xf32>
    %68 = arith.mulf %63, %67 : vector<8x128xf32>
    %69 = vector.broadcast %40 : vector<1x128xf32> to vector<8x128xf32>
    %70 = arith.mulf %68, %69 : vector<8x128xf32>
    %71 = vector.broadcast %41 : vector<1x128xf32> to vector<8x128xf32>
    %72 = arith.addf %70, %71 : vector<8x128xf32>
    %c1 = arith.constant 1 : index
    %c0_23 = arith.constant 0 : index
    %c0_24 = arith.constant 0 : index
    %73 = vector.load %arg3[%c1, %c0_23, %c0_24] : memref<5x128x128xbf16, #tpu.memory_space<vmem>>, vector<1x128x128xbf16>
    %74 = vector.shape_cast %73 : vector<1x128x128xbf16> to vector<128x128xbf16>
    %75 = vector.extract_strided_slice %0 {offsets = [6, 0], sizes = [1, 128], strides = [1, 1]} : vector<16x128xf32> to vector<1x128xf32>
    %76 = vector.extract_strided_slice %0 {offsets = [7, 0], sizes = [1, 128], strides = [1, 1]} : vector<16x128xf32> to vector<1x128xf32>
    %77 = vector.extract_strided_slice %0 {offsets = [8, 0], sizes = [1, 128], strides = [1, 1]} : vector<16x128xf32> to vector<1x128xf32>
    %78 = arith.truncf %72 : vector<8x128xf32> to vector<8x128xbf16>
    %cst_25 = arith.constant dense<0.000000e+00> : vector<8x128xf32>
    %79 = tpu.matmul %78, %74, %cst_25 {dimension_numbers = #tpu.dot_dimension_numbers<[1], [0], [0], [1], [0, 0, 1, 1], [], []>} : vector<8x128xbf16>, vector<128x128xbf16>, vector<8x128xf32> -> vector<8x128xf32>
    %80 = vector.broadcast %75 : vector<1x128xf32> to vector<8x128xf32>
    %81 = arith.addf %79, %80 : vector<8x128xf32>
    %cst_26 = arith.constant 0.000000e+00 : f32
    %82 = vector.broadcast %cst_26 : f32 to vector<8x128xf32>
    %83 = arith.cmpf oge, %81, %82 : vector<8x128xf32>
    %cst_27 = arith.constant 0.00999999977 : f32
    %84 = vector.broadcast %cst_27 : f32 to vector<8x128xf32>
    %85 = arith.mulf %84, %81 : vector<8x128xf32>
    %86 = arith.select %83, %81, %85 : vector<8x128xi1>, vector<8x128xf32>
    %cst_28 = arith.constant dense<0.000000e+00> : vector<128xf32>
    %87 = vector.multi_reduction <add>, %86, %cst_28 [0] : vector<8x128xf32> to vector<128xf32>
    %88 = vector.shape_cast %87 : vector<128xf32> to vector<1x128xf32>
    %cst_29 = arith.constant 8.000000e+00 : f32
    %89 = vector.broadcast %cst_29 : f32 to vector<1x128xf32>
    %90 = arith.divf %88, %89 : vector<1x128xf32>
    %91 = vector.broadcast %90 : vector<1x128xf32> to vector<8x128xf32>
    %92 = arith.subf %86, %91 : vector<8x128xf32>
    %93 = arith.mulf %92, %92 : vector<8x128xf32>
    %cst_30 = arith.constant dense<0.000000e+00> : vector<128xf32>
    %94 = vector.multi_reduction <add>, %93, %cst_30 [0] : vector<8x128xf32> to vector<128xf32>
    %95 = vector.shape_cast %94 : vector<128xf32> to vector<1x128xf32>
    %cst_31 = arith.constant 8.000000e+00 : f32
    %96 = vector.broadcast %cst_31 : f32 to vector<1x128xf32>
    %97 = arith.divf %95, %96 : vector<1x128xf32>
    %98 = vector.broadcast %90 : vector<1x128xf32> to vector<8x128xf32>
    %99 = arith.subf %86, %98 : vector<8x128xf32>
    %cst_32 = arith.constant 9.99999974E-6 : f32
    %100 = vector.broadcast %cst_32 : f32 to vector<1x128xf32>
    %101 = arith.addf %97, %100 : vector<1x128xf32>
    %102 = math.rsqrt %101 : vector<1x128xf32>
    %103 = vector.broadcast %102 : vector<1x128xf32> to vector<8x128xf32>
    %104 = arith.mulf %99, %103 : vector<8x128xf32>
    %105 = vector.broadcast %76 : vector<1x128xf32> to vector<8x128xf32>
    %106 = arith.mulf %104, %105 : vector<8x128xf32>
    %107 = vector.broadcast %77 : vector<1x128xf32> to vector<8x128xf32>
    %108 = arith.addf %106, %107 : vector<8x128xf32>
    %c2 = arith.constant 2 : index
    %c0_33 = arith.constant 0 : index
    %c0_34 = arith.constant 0 : index
    %109 = vector.load %arg3[%c2, %c0_33, %c0_34] : memref<5x128x128xbf16, #tpu.memory_space<vmem>>, vector<1x128x128xbf16>
    %110 = vector.shape_cast %109 : vector<1x128x128xbf16> to vector<128x128xbf16>
    %111 = vector.extract_strided_slice %0 {offsets = [9, 0], sizes = [1, 128], strides = [1, 1]} : vector<16x128xf32> to vector<1x128xf32>
    %112 = vector.extract_strided_slice %0 {offsets = [10, 0], sizes = [1, 128], strides = [1, 1]} : vector<16x128xf32> to vector<1x128xf32>
    %113 = vector.extract_strided_slice %0 {offsets = [11, 0], sizes = [1, 128], strides = [1, 1]} : vector<16x128xf32> to vector<1x128xf32>
    %114 = arith.truncf %108 : vector<8x128xf32> to vector<8x128xbf16>
    %cst_35 = arith.constant dense<0.000000e+00> : vector<8x128xf32>
    %115 = tpu.matmul %114, %110, %cst_35 {dimension_numbers = #tpu.dot_dimension_numbers<[1], [0], [0], [1], [0, 0, 1, 1], [], []>} : vector<8x128xbf16>, vector<128x128xbf16>, vector<8x128xf32> -> vector<8x128xf32>
    %116 = vector.broadcast %111 : vector<1x128xf32> to vector<8x128xf32>
    %117 = arith.addf %115, %116 : vector<8x128xf32>
    %cst_36 = arith.constant 0.000000e+00 : f32
    %118 = vector.broadcast %cst_36 : f32 to vector<8x128xf32>
    %119 = arith.cmpf oge, %117, %118 : vector<8x128xf32>
    %cst_37 = arith.constant 0.00999999977 : f32
    %120 = vector.broadcast %cst_37 : f32 to vector<8x128xf32>
    %121 = arith.mulf %120, %117 : vector<8x128xf32>
    %122 = arith.select %119, %117, %121 : vector<8x128xi1>, vector<8x128xf32>
    %cst_38 = arith.constant dense<0.000000e+00> : vector<128xf32>
    %123 = vector.multi_reduction <add>, %122, %cst_38 [0] : vector<8x128xf32> to vector<128xf32>
    %124 = vector.shape_cast %123 : vector<128xf32> to vector<1x128xf32>
    %cst_39 = arith.constant 8.000000e+00 : f32
    %125 = vector.broadcast %cst_39 : f32 to vector<1x128xf32>
    %126 = arith.divf %124, %125 : vector<1x128xf32>
    %127 = vector.broadcast %126 : vector<1x128xf32> to vector<8x128xf32>
    %128 = arith.subf %122, %127 : vector<8x128xf32>
    %129 = arith.mulf %128, %128 : vector<8x128xf32>
    %cst_40 = arith.constant dense<0.000000e+00> : vector<128xf32>
    %130 = vector.multi_reduction <add>, %129, %cst_40 [0] : vector<8x128xf32> to vector<128xf32>
    %131 = vector.shape_cast %130 : vector<128xf32> to vector<1x128xf32>
    %cst_41 = arith.constant 8.000000e+00 : f32
    %132 = vector.broadcast %cst_41 : f32 to vector<1x128xf32>
    %133 = arith.divf %131, %132 : vector<1x128xf32>
    %134 = vector.broadcast %126 : vector<1x128xf32> to vector<8x128xf32>
    %135 = arith.subf %122, %134 : vector<8x128xf32>
    %cst_42 = arith.constant 9.99999974E-6 : f32
    %136 = vector.broadcast %cst_42 : f32 to vector<1x128xf32>
    %137 = arith.addf %133, %136 : vector<1x128xf32>
    %138 = math.rsqrt %137 : vector<1x128xf32>
    %139 = vector.broadcast %138 : vector<1x128xf32> to vector<8x128xf32>
    %140 = arith.mulf %135, %139 : vector<8x128xf32>
    %141 = vector.broadcast %112 : vector<1x128xf32> to vector<8x128xf32>
    %142 = arith.mulf %140, %141 : vector<8x128xf32>
    %143 = vector.broadcast %113 : vector<1x128xf32> to vector<8x128xf32>
    %144 = arith.addf %142, %143 : vector<8x128xf32>
    %c3 = arith.constant 3 : index
    %c0_43 = arith.constant 0 : index
    %c0_44 = arith.constant 0 : index
    %145 = vector.load %arg3[%c3, %c0_43, %c0_44] : memref<5x128x128xbf16, #tpu.memory_space<vmem>>, vector<1x128x128xbf16>
    %146 = vector.shape_cast %145 : vector<1x128x128xbf16> to vector<128x128xbf16>
    %147 = vector.extract_strided_slice %0 {offsets = [12, 0], sizes = [1, 128], strides = [1, 1]} : vector<16x128xf32> to vector<1x128xf32>
    %148 = vector.extract_strided_slice %0 {offsets = [13, 0], sizes = [1, 128], strides = [1, 1]} : vector<16x128xf32> to vector<1x128xf32>
    %149 = vector.extract_strided_slice %0 {offsets = [14, 0], sizes = [1, 128], strides = [1, 1]} : vector<16x128xf32> to vector<1x128xf32>
    %150 = arith.truncf %144 : vector<8x128xf32> to vector<8x128xbf16>
    %cst_45 = arith.constant dense<0.000000e+00> : vector<8x128xf32>
    %151 = tpu.matmul %150, %146, %cst_45 {dimension_numbers = #tpu.dot_dimension_numbers<[1], [0], [0], [1], [0, 0, 1, 1], [], []>} : vector<8x128xbf16>, vector<128x128xbf16>, vector<8x128xf32> -> vector<8x128xf32>
    %152 = vector.broadcast %147 : vector<1x128xf32> to vector<8x128xf32>
    %153 = arith.addf %151, %152 : vector<8x128xf32>
    %cst_46 = arith.constant 0.000000e+00 : f32
    %154 = vector.broadcast %cst_46 : f32 to vector<8x128xf32>
    %155 = arith.cmpf oge, %153, %154 : vector<8x128xf32>
    %cst_47 = arith.constant 0.00999999977 : f32
    %156 = vector.broadcast %cst_47 : f32 to vector<8x128xf32>
    %157 = arith.mulf %156, %153 : vector<8x128xf32>
    %158 = arith.select %155, %153, %157 : vector<8x128xi1>, vector<8x128xf32>
    %cst_48 = arith.constant dense<0.000000e+00> : vector<128xf32>
    %159 = vector.multi_reduction <add>, %158, %cst_48 [0] : vector<8x128xf32> to vector<128xf32>
    %160 = vector.shape_cast %159 : vector<128xf32> to vector<1x128xf32>
    %cst_49 = arith.constant 8.000000e+00 : f32
    %161 = vector.broadcast %cst_49 : f32 to vector<1x128xf32>
    %162 = arith.divf %160, %161 : vector<1x128xf32>
    %163 = vector.broadcast %162 : vector<1x128xf32> to vector<8x128xf32>
    %164 = arith.subf %158, %163 : vector<8x128xf32>
    %165 = arith.mulf %164, %164 : vector<8x128xf32>
    %cst_50 = arith.constant dense<0.000000e+00> : vector<128xf32>
    %166 = vector.multi_reduction <add>, %165, %cst_50 [0] : vector<8x128xf32> to vector<128xf32>
    %167 = vector.shape_cast %166 : vector<128xf32> to vector<1x128xf32>
    %cst_51 = arith.constant 8.000000e+00 : f32
    %168 = vector.broadcast %cst_51 : f32 to vector<1x128xf32>
    %169 = arith.divf %167, %168 : vector<1x128xf32>
    %170 = vector.broadcast %162 : vector<1x128xf32> to vector<8x128xf32>
    %171 = arith.subf %158, %170 : vector<8x128xf32>
    %cst_52 = arith.constant 9.99999974E-6 : f32
    %172 = vector.broadcast %cst_52 : f32 to vector<1x128xf32>
    %173 = arith.addf %169, %172 : vector<1x128xf32>
    %174 = math.rsqrt %173 : vector<1x128xf32>
    %175 = vector.broadcast %174 : vector<1x128xf32> to vector<8x128xf32>
    %176 = arith.mulf %171, %175 : vector<8x128xf32>
    %177 = vector.broadcast %148 : vector<1x128xf32> to vector<8x128xf32>
    %178 = arith.mulf %176, %177 : vector<8x128xf32>
    %179 = vector.broadcast %149 : vector<1x128xf32> to vector<8x128xf32>
    %180 = arith.addf %178, %179 : vector<8x128xf32>
    %181 = arith.truncf %180 : vector<8x128xf32> to vector<8x128xbf16>
    %c4 = arith.constant 4 : index
    %c0_53 = arith.constant 0 : index
    %c0_54 = arith.constant 0 : index
    %182 = vector.load %arg3[%c4, %c0_53, %c0_54] : memref<5x128x128xbf16, #tpu.memory_space<vmem>>, vector<1x128x128xbf16>
    %183 = vector.shape_cast %182 : vector<1x128x128xbf16> to vector<128x128xbf16>
    %cst_55 = arith.constant dense<0.000000e+00> : vector<8x128xf32>
    %184 = tpu.matmul %181, %183, %cst_55 {dimension_numbers = #tpu.dot_dimension_numbers<[1], [0], [0], [1], [0, 0, 1, 1], [], []>} : vector<8x128xbf16>, vector<128x128xbf16>, vector<8x128xf32> -> vector<8x128xf32>
    %185 = vector.extract_strided_slice %0 {offsets = [15, 0], sizes = [1, 128], strides = [1, 1]} : vector<16x128xf32> to vector<1x128xf32>
    %186 = vector.broadcast %185 : vector<1x128xf32> to vector<8x128xf32>
    %187 = arith.addf %184, %186 : vector<8x128xf32>
    %cst_56 = arith.constant dense<0xFF800000> : vector<8xf32>
    %188 = vector.multi_reduction <maximumf>, %187, %cst_56 [1] : vector<8x128xf32> to vector<8xf32>
    %189 = vector.shape_cast %188 : vector<8xf32> to vector<8x1xf32>
    %190 = vector.broadcast %189 : vector<8x1xf32> to vector<8x128xf32>
    %191 = arith.subf %187, %190 : vector<8x128xf32>
    %192 = math.exp %191 : vector<8x128xf32>
    %cst_57 = arith.constant dense<0.000000e+00> : vector<8xf32>
    %193 = vector.multi_reduction <add>, %192, %cst_57 [1] : vector<8x128xf32> to vector<8xf32>
    %194 = vector.shape_cast %193 : vector<8xf32> to vector<8x1xf32>
    %195 = math.log %194 : vector<8x1xf32>
    %196 = vector.broadcast %195 : vector<8x1xf32> to vector<8x128xf32>
    %197 = arith.subf %191, %196 : vector<8x128xf32>
    %c0_58 = arith.constant 0 : index
    %c0_59 = arith.constant 0 : index
    %198 = vector.load %arg5[%c0_58, %c0_59] : memref<8x128xf32, #tpu.memory_space<vmem>>, vector<8x128xf32>
    tpu.vector_store %arg5[%c0_58, %c0_59], %197 {strides = array<i32>} : memref<8x128xf32, #tpu.memory_space<vmem>>, vector<8x128xf32>,
    return
  }
  func.func @transform_0(%arg0: i32) -> (i32, i32) {
    %c0_i32 = arith.constant 0 : i32
    %c0_i32_0 = arith.constant 0 : i32
    %c0_i32_1 = arith.constant 0 : i32
    return %c0_i32, %c0_i32_0 : i32, i32
  }
  func.func @transform_1(%arg0: i32) -> (i32, i32) {
    %c0_i32 = arith.constant 0 : i32
    %c0_i32_0 = arith.constant 0 : i32
    %c0_i32_1 = arith.constant 0 : i32
    return %c0_i32, %c0_i32_0 : i32, i32
  }
  func.func @transform_2(%arg0: i32) -> (i32, i32, i32) {
    %c0_i32 = arith.constant 0 : i32
    %c0_i32_0 = arith.constant 0 : i32
    %c0_i32_1 = arith.constant 0 : i32
    %c0_i32_2 = arith.constant 0 : i32
    return %c0_i32, %c0_i32_0, %c0_i32_1 : i32, i32, i32
  }
  func.func @transform_3(%arg0: i32) -> (i32, i32) {
    %c0_i32 = arith.constant 0 : i32
    %c0_i32_0 = arith.constant 0 : i32
    %c0_i32_1 = arith.constant 0 : i32
    return %c0_i32, %c0_i32_0 : i32, i32
  }
  func.func @transform_4(%arg0: i32) -> (i32, i32) {
    %c0_i32 = arith.constant 0 : i32
    %c0_i32_0 = arith.constant 0 : i32
    %c0_i32_1 = arith.constant 0 : i32
    return %c0_i32, %c0_i32_0 : i32, i32
  }
}

</mosaic_0001>

<llo_original>
// kernel: image_classifier_forward.1
$region0: #{image_classifier_forward.1}
  #allocation0 [shape = 'u32[]', space=smem, size = 0x4, offset = 0x4, fixed_abs, tag = 'smem constant byte address 0x4 - core index']
  #allocation1 [shape = 'u32[144,128]{1,0:T(1,128)}', space=vmem, size = 0x12000, scoped, tag = 'internal scratch']
  %s0 = inlined_call_operand.hbm [shape: f32[8,256], index: 0, kind: input, shape index: {}]
  %s1 = inlined_call_operand.hbm [shape: bf16[256,128], index: 1, kind: input, shape index: {}]
  %s2 = inlined_call_operand.hbm [shape: bf16[5,128,128], index: 2, kind: input, shape index: {}]
  %s3 = inlined_call_operand.hbm [shape: f32[16,128], index: 3, kind: input, shape index: {}]
  %s4 = inlined_call_operand.hbm [shape: f32[8,128], index: 4, kind: output, shape index: {}]
  %s5 = sld [smem:[#allocation0]]
  $region42: #{image_classifier_forward.1} parent=0
    _
  %s7 = ssub.s32 1, %s5
  %s8 = scalar_select 0, %s7, %s5
  $region1: #{image_classifier_forward.1} parent=0
    #allocation2 [shape = 'u8[8192]{0}', space=vmem, size = 0x2000, scoped, tag = 'input window, operand 0, single buffered']
    #allocation3 [shape = 's32[1]{0}', space=sflag, size = 0x4, scoped, tag = 'scoped memory for image_classifier_forward.1']
    #allocation4 [shape = 's32[1]{0}', space=sflag, size = 0x4, scoped, tag = 'scoped memory for image_classifier_forward.1']
    #allocation5 [shape = 'u8[65536]{0}', space=vmem, size = 0x10000, scoped, tag = 'input window, operand 1, single buffered']
    #allocation6 [shape = 's32[1]{0}', space=sflag, size = 0x4, scoped, tag = 'scoped memory for image_classifier_forward.1']
    #allocation7 [shape = 'u8[163840]{0}', space=vmem, size = 0x28000, scoped, tag = 'input window, operand 2, single buffered']
    #allocation8 [shape = 'u8[8192]{0}', space=vmem, size = 0x2000, scoped, tag = 'input window, operand 3, single buffered']
    #allocation9 [shape = 's32[1]{0}', space=sflag, size = 0x4, scoped, tag = 'scoped memory for image_classifier_forward.1']
    #allocation10 [shape = 'u8[4096]{0}', space=vmem, size = 0x1000, scoped, tag = 'output window, operand 0, single buffered']
    %9 = vsyncpa [#allocation3], 0
    %10 = vsyncpa [#allocation6], 0
    %11 = vsyncpa [#allocation9], 0
    %12 = vsyncpa [#allocation4], 0
    // Predicated region
    $region2: #{image_classifier_forward.1} parent=1 // pred_check
      _
    $region3: #{image_classifier_forward.1} parent=1 // pred_check_branch
      %14 = sbr.rel (0) target = $region5
    $region4: #{image_classifier_forward.1} parent=1 // pred_region
      %s16 = ssub.s32 256, 256
      %17 = vsyncadd [#allocation3], %s16
      %s19 = sshll.u32 [#allocation2], 4
      %s20 = int_to_ptr.vmem [resolvable:$true] %s19
      %22 = dma.hbm_to_vmem [thread:$0]  %s0, 256, %s20, [#allocation3]
    $region5: #{image_classifier_forward.1} parent=1 // pred_fallthru
      _
    // Predicated region
    $region6: #{image_classifier_forward.1} parent=1 // pred_check
      _
    $region7: #{image_classifier_forward.1} parent=1 // pred_check_branch
      %24 = sbr.rel (0) target = $region9
    $region8: #{image_classifier_forward.1} parent=1 // pred_region
      %s26 = ssub.s32 2048, 2048
      %27 = vsyncadd [#allocation6], %s26
      %s28 = sshll.u32 [#allocation5], 4
      %s29 = int_to_ptr.vmem [resolvable:$true] %s28
      %34 = dma.hbm_to_vmem [thread:$0]  %s1, 2048, %s29, [#allocation6], 64, 64, 4
    $region9: #{image_classifier_forward.1} parent=1 // pred_fallthru
      _
    // Predicated region
    $region10: #{image_classifier_forward.1} parent=1 // pred_check
      _
    $region11: #{image_classifier_forward.1} parent=1 // pred_check_branch
      %36 = sbr.rel (0) target = $region13
    $region12: #{image_classifier_forward.1} parent=1 // pred_region
      %s38 = ssub.s32 5120, 5120
      %39 = vsyncadd [#allocation6], %s38
      %s40 = sshll.u32 [#allocation7], 4
      %s41 = int_to_ptr.vmem [resolvable:$true] %s40
      %46 = dma.hbm_to_vmem [thread:$0]  %s2, 5120, %s41, [#allocation6], 64, 64, 4
    $region13: #{image_classifier_forward.1} parent=1 // pred_fallthru
      _
    // Predicated region
    $region14: #{image_classifier_forward.1} parent=1 // pred_check
      _
    $region15: #{image_classifier_forward.1} parent=1 // pred_check_branch
      %48 = sbr.rel (0) target = $region17
    $region16: #{image_classifier_forward.1} parent=1 // pred_region
      %s50 = ssub.s32 256, 256
      %51 = vsyncadd [#allocation9], %s50
      %s52 = sshll.u32 [#allocation8], 4
      %s53 = int_to_ptr.vmem [resolvable:$true] %s52
      %58 = dma.hbm_to_vmem [thread:$0]  %s3, 256, %s53, [#allocation9], 128, 128, 8
    $region17: #{image_classifier_forward.1} parent=1 // pred_fallthru
      _
    // Predicated region
    $region18: #{image_classifier_forward.1} parent=1 // pred_check
      _
    $region19: #{image_classifier_forward.1} parent=1 // pred_check_branch
      %60 = sbr.rel (0) target = $region21
    $region20: #{image_classifier_forward.1} parent=1 // pred_region
      %61 = dma.done [#allocation3], 256
    $region21: #{image_classifier_forward.1} parent=1 // pred_fallthru
      _
    // Predicated region
    $region22: #{image_classifier_forward.1} parent=1 // pred_check
      _
    $region23: #{image_classifier_forward.1} parent=1 // pred_check_branch
      %63 = sbr.rel (0) target = $region25
    $region24: #{image_classifier_forward.1} parent=1 // pred_region
      %64 = dma.done [#allocation6], 2048
    $region25: #{image_classifier_forward.1} parent=1 // pred_fallthru
      _
    // Predicated region
    $region26: #{image_classifier_forward.1} parent=1 // pred_check
      _
    $region27: #{image_classifier_forward.1} parent=1 // pred_check_branch
      %66 = sbr.rel (0) target = $region29
    $region28: #{image_classifier_forward.1} parent=1 // pred_region
      %67 = dma.done [#allocation6], 5120
    $region29: #{image_classifier_forward.1} parent=1 // pred_fallthru
      _
    // Predicated region
    $region30: #{image_classifier_forward.1} parent=1 // pred_check
      _
    $region31: #{image_classifier_forward.1} parent=1 // pred_check_branch
      %69 = sbr.rel (0) target = $region33
    $region32: #{image_classifier_forward.1} parent=1 // pred_region
      %70 = dma.done [#allocation9], 256
    $region33: #{image_classifier_forward.1} parent=1 // pred_fallthru
      _
    %v72 = vld [vmem:[#allocation8] sm:$0xff]
    %v73 = vld [vmem:[#allocation8 + $0x8] sm:$0xff]
    %v74 = vld [vmem:[#allocation2] sm:$0xff]
    %v75 = vld [vmem:[#allocation2 + $0x8] sm:$0xff]
    %v76 = vld [vmem:[#allocation5] sm:$0xf]
    %v77 = vld [vmem:[#allocation5 + $0x4] sm:$0xf]
    %v78 = vld [vmem:[#allocation5 + $0x8] sm:$0xf]
    %v79 = vld [vmem:[#allocation5 + $0xc] sm:$0xf]
    %v80 = vld [vmem:[#allocation5 + $0x10] sm:$0xf]
    %v81 = vld [vmem:[#allocation5 + $0x14] sm:$0xf]
    %v82 = vld [vmem:[#allocation5 + $0x18] sm:$0xf]
    %v83 = vld [vmem:[#allocation5 + $0x1c] sm:$0xf]
    %v84 = vld [vmem:[#allocation5 + $0x20] sm:$0xf]
    %v85 = vld [vmem:[#allocation5 + $0x24] sm:$0xf]
    %v86 = vld [vmem:[#allocation5 + $0x28] sm:$0xf]
    %v87 = vld [vmem:[#allocation5 + $0x2c] sm:$0xf]
    %v88 = vld [vmem:[#allocation5 + $0x30] sm:$0xf]
    %v89 = vld [vmem:[#allocation5 + $0x34] sm:$0xf]
    %v90 = vld [vmem:[#allocation5 + $0x38] sm:$0xf]
    %v91 = vld [vmem:[#allocation5 + $0x3c] sm:$0xf]
    %v92 = vld [vmem:[#allocation5 + $0x40] sm:$0xf]
    %v93 = vld [vmem:[#allocation5 + $0x44] sm:$0xf]
    %v94 = vld [vmem:[#allocation5 + $0x48] sm:$0xf]
    %v95 = vld [vmem:[#allocation5 + $0x4c] sm:$0xf]
    %v96 = vld [vmem:[#allocation5 + $0x50] sm:$0xf]
    %v97 = vld [vmem:[#allocation5 + $0x54] sm:$0xf]
    %v98 = vld [vmem:[#allocation5 + $0x58] sm:$0xf]
    %v99 = vld [vmem:[#allocation5 + $0x5c] sm:$0xf]
    %v100 = vld [vmem:[#allocation5 + $0x60] sm:$0xf]
    %v101 = vld [vmem:[#allocation5 + $0x64] sm:$0xf]
    %v102 = vld [vmem:[#allocation5 + $0x68] sm:$0xf]
    %v103 = vld [vmem:[#allocation5 + $0x6c] sm:$0xf]
    %v104 = vld [vmem:[#allocation5 + $0x70] sm:$0xf]
    %v105 = vld [vmem:[#allocation5 + $0x74] sm:$0xf]
    %v106 = vld [vmem:[#allocation5 + $0x78] sm:$0xf]
    %v107 = vld [vmem:[#allocation5 + $0x7c] sm:$0xf]
    %v108 = vpack.c.bf16 %v74, %v74
    %v109 = vpack.c.bf16 %v75, %v75
    %v110 = vlaneseq
    %v111 = vshrl.u32 %v110, 7
    %v112 = vsub.s32 0, %v111
    %v113 = vrot.slane %v72, %v112
    %v146 = vunpack.c.l.b16 %v76
    %v147 = vunpack.c.l.b16 %v77
    %v148 = vunpack.c.l.b16 %v78
    %v149 = vunpack.c.l.b16 %v79
    %v150 = vunpack.c.l.b16 %v80
    %v151 = vunpack.c.l.b16 %v81
    %v152 = vunpack.c.l.b16 %v82
    %v153 = vunpack.c.l.b16 %v83
    %v154 = vunpack.c.l.b16 %v84
    %v155 = vunpack.c.l.b16 %v85
    %v156 = vunpack.c.l.b16 %v86
    %v157 = vunpack.c.l.b16 %v87
    %v158 = vunpack.c.l.b16 %v88
    %v159 = vunpack.c.l.b16 %v89
    %v160 = vunpack.c.l.b16 %v90
    %v161 = vunpack.c.l.b16 %v91
    %v162 = vunpack.c.l.b16 %v92
    %v163 = vunpack.c.l.b16 %v93
    %v164 = vunpack.c.l.b16 %v94
    %v165 = vunpack.c.l.b16 %v95
    %v166 = vunpack.c.l.b16 %v96
    %v167 = vunpack.c.l.b16 %v97
    %v168 = vunpack.c.l.b16 %v98
    %v169 = vunpack.c.l.b16 %v99
    %v170 = vunpack.c.l.b16 %v100
    %v171 = vunpack.c.l.b16 %v101
    %v172 = vunpack.c.l.b16 %v102
    %v173 = vunpack.c.l.b16 %v103
    %v174 = vunpack.c.l.b16 %v104
    %v175 = vunpack.c.l.b16 %v105
    %v176 = vunpack.c.l.b16 %v106
    %v177 = vunpack.c.l.b16 %v107
    %v178 = vpack.c.b16 %v147, %v146
    %v179 = vpack.c.b16 %v149, %v148
    %v180 = vpack.c.b16 %v151, %v150
    %v181 = vpack.c.b16 %v153, %v152
    %v182 = vpack.c.b16 %v155, %v154
    %v183 = vpack.c.b16 %v157, %v156
    %v184 = vpack.c.b16 %v159, %v158
    %v185 = vpack.c.b16 %v161, %v160
    %v186 = vpack.c.b16 %v163, %v162
    %v187 = vpack.c.b16 %v165, %v164
    %v188 = vpack.c.b16 %v167, %v166
    %v189 = vpack.c.b16 %v169, %v168
    %v190 = vpack.c.b16 %v171, %v170
    %v191 = vpack.c.b16 %v173, %v172
    %v192 = vpack.c.b16 %v175, %v174
    %v193 = vpack.c.b16 %v177, %v176
    %210 = vmatprep.subr.bf16.mxu0 0
    %211 = vmatpush1.bf16.msra.mxu0 %v185
    %212 = vmatprep.subr.bf16.mxu0 0
    %213 = vmatpush1.bf16.msra.mxu0 %v184
    %214 = vmatprep.subr.bf16.mxu0 0
    %215 = vmatpush1.bf16.msra.mxu0 %v183
    %216 = vmatprep.subr.bf16.mxu0 0
    %217 = vmatpush1.bf16.msra.mxu0 %v182
    %218 = vmatprep.subr.bf16.mxu0 0
    %219 = vmatpush1.bf16.msra.mxu0 %v181
    %220 = vmatprep.subr.bf16.mxu0 0
    %221 = vmatpush1.bf16.msra.mxu0 %v180
    %222 = vmatprep.subr.bf16.mxu0 0
    %223 = vmatpush1.bf16.msra.mxu0 %v179
    %224 = vmatprep.subr.bf16.mxu0 0
    %225 = vmatpush1.bf16.msra.mxu0 %v178
    %226 = vmatprep.subr.bf16.mxu0 0
    %227 = vmatpush2.bf16.msra.mxu0 %v193
    %228 = vmatprep.subr.bf16.mxu0 0
    %229 = vmatpush2.bf16.msra.mxu0 %v192
    %230 = vmatprep.subr.bf16.mxu0 0
    %231 = vmatpush2.bf16.msra.mxu0 %v191
    %232 = vmatprep.subr.bf16.mxu0 0
    %233 = vmatpush2.bf16.msra.mxu0 %v190
    %234 = vmatprep.subr.bf16.mxu0 0
    %235 = vmatpush2.bf16.msra.mxu0 %v189
    %236 = vmatprep.subr.bf16.mxu0 0
    %237 = vmatpush2.bf16.msra.mxu0 %v188
    %238 = vmatprep.subr.bf16.mxu0 0
    %239 = vmatpush2.bf16.msra.mxu0 %v187
    %240 = vmatprep.subr.bf16.mxu0 0
    %241 = vmatpush2.bf16.msra.mxu0 %v186
    %242 = vmatprep.mubr.bf16.mxu0 %v109
    %243 = vmatmul.mubr.bf16.gmra.mxu0 %v108
    %v244 = vpop.f32.mrf.mxu0
    %v245 = vadd.f32 %v113, %v244
    %v246 = vpop.f32.mrf.mxu0
    %v247 = vpop.f32.mrf.mxu0
    %v248 = vpop.f32.mrf.mxu0
    %249 = vdwg.mxu0
    %vm250 = vcmp.ge.f32.partialorder %v245, 0.0
    %v251 = vmul.f32 %v245, 0.01
    %v252 = vsel %vm250, %v245, %v251
    %v253 = vrot.slane %v252, 4
    %v254 = vadd.f32 %v252, %v253
    %v255 = vrot.slane %v254, 2
    %v256 = vadd.f32 %v254, %v255
    %v257 = vrot.slane %v256, 1
    %v258 = vadd.f32 %v256, %v257
    %v259 = vrcp.pop 8.0
    %v260 = vmul.f32 %v258, %v259
    %v261 = vsub.f32 %v252, %v260
    %v262 = vmul.f32 %v261, %v261
    %v263 = vrot.slane %v262, 4
    %v264 = vadd.f32 %v262, %v263
    %v265 = vrot.slane %v264, 2
    %v266 = vadd.f32 %v264, %v265
    %v267 = vrot.slane %v266, 1
    %v268 = vadd.f32 %v266, %v267
    %v269 = vmul.f32 %v268, %v259
    %v270 = vadd.f32 %v269, 1e-05
    %v271 = vrsqrt.pop %v270
    %v272 = vmul.f32 %v261, %v271
    %v273 = vlaneseq
    %v274 = vshrl.u32 %v273, 7
    %v275 = vsub.s32 1, %v274
    %v276 = vrot.slane %v72, %v275
    %v277 = vmul.f32 %v272, %v276
    %v278 = vlaneseq
    %v279 = vshrl.u32 %v278, 7
    %v280 = vsub.s32 2, %v279
    %v281 = vrot.slane %v72, %v280
    %v282 = vadd.f32 %v277, %v281
    %v283 = vld [vmem:[#allocation7] sm:$0xf]
    %v284 = vld [vmem:[#allocation7 + $0x4] sm:$0xf]
    %v285 = vld [vmem:[#allocation7 + $0x8] sm:$0xf]
    %v286 = vld [vmem:[#allocation7 + $0xc] sm:$0xf]
    %v287 = vld [vmem:[#allocation7 + $0x10] sm:$0xf]
    %v288 = vld [vmem:[#allocation7 + $0x14] sm:$0xf]
    %v289 = vld [vmem:[#allocation7 + $0x18] sm:$0xf]
    %v290 = vld [vmem:[#allocation7 + $0x1c] sm:$0xf]
    %v291 = vld [vmem:[#allocation7 + $0x20] sm:$0xf]
    %v292 = vld [vmem:[#allocation7 + $0x24] sm:$0xf]
    %v293 = vld [vmem:[#allocation7 + $0x28] sm:$0xf]
    %v294 = vld [vmem:[#allocation7 + $0x2c] sm:$0xf]
    %v295 = vld [vmem:[#allocation7 + $0x30] sm:$0xf]
    %v296 = vld [vmem:[#allocation7 + $0x34] sm:$0xf]
    %v297 = vld [vmem:[#allocation7 + $0x38] sm:$0xf]
    %v298 = vld [vmem:[#allocation7 + $0x3c] sm:$0xf]
    %v299 = vpack.c.bf16 %v282, %v282
    %v300 = vlaneseq
    %v301 = vshrl.u32 %v300, 7
    %v302 = vsub.s32 3, %v301
    %v303 = vrot.slane %v72, %v302
    %v320 = vunpack.c.l.b16 %v283
    %v321 = vunpack.c.l.b16 %v284
    %v322 = vunpack.c.l.b16 %v285
    %v323 = vunpack.c.l.b16 %v286
    %v324 = vunpack.c.l.b16 %v287
    %v325 = vunpack.c.l.b16 %v288
    %v326 = vunpack.c.l.b16 %v289
    %v327 = vunpack.c.l.b16 %v290
    %v328 = vunpack.c.l.b16 %v291
    %v329 = vunpack.c.l.b16 %v292
    %v330 = vunpack.c.l.b16 %v293
    %v331 = vunpack.c.l.b16 %v294
    %v332 = vunpack.c.l.b16 %v295
    %v333 = vunpack.c.l.b16 %v296
    %v334 = vunpack.c.l.b16 %v297
    %v335 = vunpack.c.l.b16 %v298
    %v336 = vpack.c.b16 %v321, %v320
    %v337 = vpack.c.b16 %v323, %v322
    %v338 = vpack.c.b16 %v325, %v324
    %v339 = vpack.c.b16 %v327, %v326
    %v340 = vpack.c.b16 %v329, %v328
    %v341 = vpack.c.b16 %v331, %v330
    %v342 = vpack.c.b16 %v333, %v332
    %v343 = vpack.c.b16 %v335, %v334
    %352 = vmatprep.subr.bf16.mxu0 0
    %353 = vmatpush1.bf16.msra.mxu0 %v343
    %354 = vmatprep.subr.bf16.mxu0 0
    %355 = vmatpush1.bf16.msra.mxu0 %v342
    %356 = vmatprep.subr.bf16.mxu0 0
    %357 = vmatpush1.bf16.msra.mxu0 %v341
    %358 = vmatprep.subr.bf16.mxu0 0
    %359 = vmatpush1.bf16.msra.mxu0 %v340
    %360 = vmatprep.subr.bf16.mxu0 0
    %361 = vmatpush1.bf16.msra.mxu0 %v339
    %362 = vmatprep.subr.bf16.mxu0 0
    %363 = vmatpush1.bf16.msra.mxu0 %v338
    %364 = vmatprep.subr.bf16.mxu0 0
    %365 = vmatpush1.bf16.msra.mxu0 %v337
    %366 = vmatprep.subr.bf16.mxu0 0
    %367 = vmatpush1.bf16.msra.mxu0 %v336
    %368 = vmatprep.subr.bf16.mxu0 0
    %369 = vmatpush2.bf16.msra.mxu0 0
    %370 = vmatprep.subr.bf16.mxu0 0
    %371 = vmatpush2.bf16.msra.mxu0 0
    %372 = vmatprep.subr.bf16.mxu0 0
    %373 = vmatpush2.bf16.msra.mxu0 0
    %374 = vmatprep.subr.bf16.mxu0 0
    %375 = vmatpush2.bf16.msra.mxu0 0
    %376 = vmatprep.subr.bf16.mxu0 0
    %377 = vmatpush2.bf16.msra.mxu0 0
    %378 = vmatprep.subr.bf16.mxu0 0
    %379 = vmatpush2.bf16.msra.mxu0 0
    %380 = vmatprep.subr.bf16.mxu0 0
    %381 = vmatpush2.bf16.msra.mxu0 0
    %382 = vmatprep.subr.bf16.mxu0 0
    %383 = vmatpush2.bf16.msra.mxu0 0
    %384 = vmatprep.mubr.bf16.mxu0 0
    %385 = vmatmul.mubr.bf16.gmra.mxu0 %v299
    %v386 = vpop.f32.mrf.mxu0
    %v387 = vadd.f32 %v303, %v386
    %v388 = vpop.f32.mrf.mxu0
    %v389 = vpop.f32.mrf.mxu0
    %v390 = vpop.f32.mrf.mxu0
    %391 = vdwg.mxu0
    %vm392 = vcmp.ge.f32.partialorder %v387, 0.0
    %v393 = vmul.f32 %v387, 0.01
    %v394 = vsel %vm392, %v387, %v393
    %v395 = vrot.slane %v394, 4
    %v396 = vadd.f32 %v394, %v395
    %v397 = vrot.slane %v396, 2
    %v398 = vadd.f32 %v396, %v397
    %v399 = vrot.slane %v398, 1
    %v400 = vadd.f32 %v398, %v399
    %v401 = vmul.f32 %v400, %v259
    %v402 = vsub.f32 %v394, %v401
    %v403 = vmul.f32 %v402, %v402
    %v404 = vrot.slane %v403, 4
    %v405 = vadd.f32 %v403, %v404
    %v406 = vrot.slane %v405, 2
    %v407 = vadd.f32 %v405, %v406
    %v408 = vrot.slane %v407, 1
    %v409 = vadd.f32 %v407, %v408
    %v410 = vmul.f32 %v409, %v259
    %v411 = vadd.f32 %v410, 1e-05
    %v412 = vrsqrt.pop %v411
    %v413 = vmul.f32 %v402, %v412
    %v414 = vlaneseq
    %v415 = vshrl.u32 %v414, 7
    %v416 = vsub.s32 4, %v415
    %v417 = vrot.slane %v72, %v416
    %v418 = vmul.f32 %v413, %v417
    %v419 = vlaneseq
    %v420 = vshrl.u32 %v419, 7
    %v421 = vsub.s32 5, %v420
    %v422 = vrot.slane %v72, %v421
    %v423 = vadd.f32 %v418, %v422
    %s424 = scalar_lea.vmem [#allocation7], 64
    %v425 = vld [vmem:[%s424] sm:$0xf]
    %v426 = vld [vmem:[%s424 + $0x4] sm:$0xf]
    %v427 = vld [vmem:[%s424 + $0x8] sm:$0xf]
    %v428 = vld [vmem:[%s424 + $0xc] sm:$0xf]
    %v429 = vld [vmem:[%s424 + $0x10] sm:$0xf]
    %v430 = vld [vmem:[%s424 + $0x14] sm:$0xf]
    %v431 = vld [vmem:[%s424 + $0x18] sm:$0xf]
    %v432 = vld [vmem:[%s424 + $0x1c] sm:$0xf]
    %v433 = vld [vmem:[%s424 + $0x20] sm:$0xf]
    %v434 = vld [vmem:[%s424 + $0x24] sm:$0xf]
    %v435 = vld [vmem:[%s424 + $0x28] sm:$0xf]
    %v436 = vld [vmem:[%s424 + $0x2c] sm:$0xf]
    %v437 = vld [vmem:[%s424 + $0x30] sm:$0xf]
    %v438 = vld [vmem:[%s424 + $0x34] sm:$0xf]
    %v439 = vld [vmem:[%s424 + $0x38] sm:$0xf]
    %v440 = vld [vmem:[%s424 + $0x3c] sm:$0xf]
    %v441 = vpack.c.bf16 %v423, %v423
    %v442 = vlaneseq
    %v443 = vshrl.u32 %v442, 7
    %v444 = vsub.s32 6, %v443
    %v445 = vrot.slane %v72, %v444
    %v462 = vunpack.c.l.b16 %v425
    %v463 = vunpack.c.l.b16 %v426
    %v464 = vunpack.c.l.b16 %v427
    %v465 = vunpack.c.l.b16 %v428
    %v466 = vunpack.c.l.b16 %v429
    %v467 = vunpack.c.l.b16 %v430
    %v468 = vunpack.c.l.b16 %v431
    %v469 = vunpack.c.l.b16 %v432
    %v470 = vunpack.c.l.b16 %v433
    %v471 = vunpack.c.l.b16 %v434
    %v472 = vunpack.c.l.b16 %v435
    %v473 = vunpack.c.l.b16 %v436
    %v474 = vunpack.c.l.b16 %v437
    %v475 = vunpack.c.l.b16 %v438
    %v476 = vunpack.c.l.b16 %v439
    %v477 = vunpack.c.l.b16 %v440
    %v478 = vpack.c.b16 %v463, %v462
    %v479 = vpack.c.b16 %v465, %v464
    %v480 = vpack.c.b16 %v467, %v466
    %v481 = vpack.c.b16 %v469, %v468
    %v482 = vpack.c.b16 %v471, %v470
    %v483 = vpack.c.b16 %v473, %v472
    %v484 = vpack.c.b16 %v475, %v474
    %v485 = vpack.c.b16 %v477, %v476
    %494 = vmatprep.subr.bf16.mxu0 0
    %495 = vmatpush1.bf16.msra.mxu0 %v485
    %496 = vmatprep.subr.bf16.mxu0 0
    %497 = vmatpush1.bf16.msra.mxu0 %v484
    %498 = vmatprep.subr.bf16.mxu0 0
    %499 = vmatpush1.bf16.msra.mxu0 %v483
    %500 = vmatprep.subr.bf16.mxu0 0
    %501 = vmatpush1.bf16.msra.mxu0 %v482
    %502 = vmatprep.subr.bf16.mxu0 0
    %503 = vmatpush1.bf16.msra.mxu0 %v481
    %504 = vmatprep.subr.bf16.mxu0 0
    %505 = vmatpush1.bf16.msra.mxu0 %v480
    %506 = vmatprep.subr.bf16.mxu0 0
    %507 = vmatpush1.bf16.msra.mxu0 %v479
    %508 = vmatprep.subr.bf16.mxu0 0
    %509 = vmatpush1.bf16.msra.mxu0 %v478
    %510 = vmatprep.subr.bf16.mxu0 0
    %511 = vmatpush2.bf16.msra.mxu0 0
    %512 = vmatprep.subr.bf16.mxu0 0
    %513 = vmatpush2.bf16.msra.mxu0 0
    %514 = vmatprep.subr.bf16.mxu0 0
    %515 = vmatpush2.bf16.msra.mxu0 0
    %516 = vmatprep.subr.bf16.mxu0 0
    %517 = vmatpush2.bf16.msra.mxu0 0
    %518 = vmatprep.subr.bf16.mxu0 0
    %519 = vmatpush2.bf16.msra.mxu0 0
    %520 = vmatprep.subr.bf16.mxu0 0
    %521 = vmatpush2.bf16.msra.mxu0 0
    %522 = vmatprep.subr.bf16.mxu0 0
    %523 = vmatpush2.bf16.msra.mxu0 0
    %524 = vmatprep.subr.bf16.mxu0 0
    %525 = vmatpush2.bf16.msra.mxu0 0
    %526 = vmatprep.mubr.bf16.mxu0 0
    %527 = vmatmul.mubr.bf16.gmra.mxu0 %v441
    %v528 = vpop.f32.mrf.mxu0
    %v529 = vadd.f32 %v445, %v528
    %v530 = vpop.f32.mrf.mxu0
    %v531 = vpop.f32.mrf.mxu0
    %v532 = vpop.f32.mrf.mxu0
    %533 = vdwg.mxu0
    %vm534 = vcmp.ge.f32.partialorder %v529, 0.0
    %v535 = vmul.f32 %v529, 0.01
    %v536 = vsel %vm534, %v529, %v535
    %v537 = vrot.slane %v536, 4
    %v538 = vadd.f32 %v536, %v537
    %v539 = vrot.slane %v538, 2
    %v540 = vadd.f32 %v538, %v539
    %v541 = vrot.slane %v540, 1
    %v542 = vadd.f32 %v540, %v541
    %v543 = vmul.f32 %v542, %v259
    %v544 = vsub.f32 %v536, %v543
    %v545 = vmul.f32 %v544, %v544
    %v546 = vrot.slane %v545, 4
    %v547 = vadd.f32 %v545, %v546
    %v548 = vrot.slane %v547, 2
    %v549 = vadd.f32 %v547, %v548
    %v550 = vrot.slane %v549, 1
    %v551 = vadd.f32 %v549, %v550
    %v552 = vmul.f32 %v551, %v259
    %v553 = vadd.f32 %v552, 1e-05
    %v554 = vrsqrt.pop %v553
    %v555 = vmul.f32 %v544, %v554
    %v556 = vlaneseq
    %v557 = vshrl.u32 %v556, 7
    %v558 = vsub.s32 7, %v557
    %v559 = vrot.slane %v72, %v558
    %v560 = vmul.f32 %v555, %v559
    %v561 = vlaneseq
    %v562 = vshrl.u32 %v561, 7
    %v563 = vsub.s32 0, %v562
    %v564 = vrot.slane %v73, %v563
    %v565 = vadd.f32 %v560, %v564
    %s566 = scalar_lea.vmem [#allocation7], 128
    %v567 = vld [vmem:[%s566] sm:$0xf]
    %v568 = vld [vmem:[%s566 + $0x4] sm:$0xf]
    %v569 = vld [vmem:[%s566 + $0x8] sm:$0xf]
    %v570 = vld [vmem:[%s566 + $0xc] sm:$0xf]
    %v571 = vld [vmem:[%s566 + $0x10] sm:$0xf]
    %v572 = vld [vmem:[%s566 + $0x14] sm:$0xf]
    %v573 = vld [vmem:[%s566 + $0x18] sm:$0xf]
    %v574 = vld [vmem:[%s566 + $0x1c] sm:$0xf]
    %v575 = vld [vmem:[%s566 + $0x20] sm:$0xf]
    %v576 = vld [vmem:[%s566 + $0x24] sm:$0xf]
    %v577 = vld [vmem:[%s566 + $0x28] sm:$0xf]
    %v578 = vld [vmem:[%s566 + $0x2c] sm:$0xf]
    %v579 = vld [vmem:[%s566 + $0x30] sm:$0xf]
    %v580 = vld [vmem:[%s566 + $0x34] sm:$0xf]
    %v581 = vld [vmem:[%s566 + $0x38] sm:$0xf]
    %v582 = vld [vmem:[%s566 + $0x3c] sm:$0xf]
    %v583 = vpack.c.bf16 %v565, %v565
    %v584 = vlaneseq
    %v585 = vshrl.u32 %v584, 7
    %v586 = vsub.s32 1, %v585
    %v587 = vrot.slane %v73, %v586
    %v604 = vunpack.c.l.b16 %v567
    %v605 = vunpack.c.l.b16 %v568
    %v606 = vunpack.c.l.b16 %v569
    %v607 = vunpack.c.l.b16 %v570
    %v608 = vunpack.c.l.b16 %v571
    %v609 = vunpack.c.l.b16 %v572
    %v610 = vunpack.c.l.b16 %v573
    %v611 = vunpack.c.l.b16 %v574
    %v612 = vunpack.c.l.b16 %v575
    %v613 = vunpack.c.l.b16 %v576
    %v614 = vunpack.c.l.b16 %v577
    %v615 = vunpack.c.l.b16 %v578
    %v616 = vunpack.c.l.b16 %v579
    %v617 = vunpack.c.l.b16 %v580
    %v618 = vunpack.c.l.b16 %v581
    %v619 = vunpack.c.l.b16 %v582
    %v620 = vpack.c.b16 %v605, %v604
    %v621 = vpack.c.b16 %v607, %v606
    %v622 = vpack.c.b16 %v609, %v608
    %v623 = vpack.c.b16 %v611, %v610
    %v624 = vpack.c.b16 %v613, %v612
    %v625 = vpack.c.b16 %v615, %v614
    %v626 = vpack.c.b16 %v617, %v616
    %v627 = vpack.c.b16 %v619, %v618
    %636 = vmatprep.subr.bf16.mxu0 0
    %637 = vmatpush1.bf16.msra.mxu0 %v627
    %638 = vmatprep.subr.bf16.mxu0 0
    %639 = vmatpush1.bf16.msra.mxu0 %v626
    %640 = vmatprep.subr.bf16.mxu0 0
    %641 = vmatpush1.bf16.msra.mxu0 %v625
    %642 = vmatprep.subr.bf16.mxu0 0
    %643 = vmatpush1.bf16.msra.mxu0 %v624
    %644 = vmatprep.subr.bf16.mxu0 0
    %645 = vmatpush1.bf16.msra.mxu0 %v623
    %646 = vmatprep.subr.bf16.mxu0 0
    %647 = vmatpush1.bf16.msra.mxu0 %v622
    %648 = vmatprep.subr.bf16.mxu0 0
    %649 = vmatpush1.bf16.msra.mxu0 %v621
    %650 = vmatprep.subr.bf16.mxu0 0
    %651 = vmatpush1.bf16.msra.mxu0 %v620
    %652 = vmatprep.subr.bf16.mxu0 0
    %653 = vmatpush2.bf16.msra.mxu0 0
    %654 = vmatprep.subr.bf16.mxu0 0
    %655 = vmatpush2.bf16.msra.mxu0 0
    %656 = vmatprep.subr.bf16.mxu0 0
    %657 = vmatpush2.bf16.msra.mxu0 0
    %658 = vmatprep.subr.bf16.mxu0 0
    %659 = vmatpush2.bf16.msra.mxu0 0
    %660 = vmatprep.subr.bf16.mxu0 0
    %661 = vmatpush2.bf16.msra.mxu0 0
    %662 = vmatprep.subr.bf16.mxu0 0
    %663 = vmatpush2.bf16.msra.mxu0 0
    %664 = vmatprep.subr.bf16.mxu0 0
    %665 = vmatpush2.bf16.msra.mxu0 0
    %666 = vmatprep.subr.bf16.mxu0 0
    %667 = vmatpush2.bf16.msra.mxu0 0
    %668 = vmatprep.mubr.bf16.mxu0 0
    %669 = vmatmul.mubr.bf16.gmra.mxu0 %v583
    %v670 = vpop.f32.mrf.mxu0
    %v671 = vadd.f32 %v587, %v670
    %v672 = vpop.f32.mrf.mxu0
    %v673 = vpop.f32.mrf.mxu0
    %v674 = vpop.f32.mrf.mxu0
    %675 = vdwg.mxu0
    %vm676 = vcmp.ge.f32.partialorder %v671, 0.0
    %v677 = vmul.f32 %v671, 0.01
    %v678 = vsel %vm676, %v671, %v677
    %v679 = vrot.slane %v678, 4
    %v680 = vadd.f32 %v678, %v679
    %v681 = vrot.slane %v680, 2
    %v682 = vadd.f32 %v680, %v681
    %v683 = vrot.slane %v682, 1
    %v684 = vadd.f32 %v682, %v683
    %v685 = vmul.f32 %v684, %v259
    %v686 = vsub.f32 %v678, %v685
    %v687 = vmul.f32 %v686, %v686
    %v688 = vrot.slane %v687, 4
    %v689 = vadd.f32 %v687, %v688
    %v690 = vrot.slane %v689, 2
    %v691 = vadd.f32 %v689, %v690
    %v692 = vrot.slane %v691, 1
    %v693 = vadd.f32 %v691, %v692
    %v694 = vmul.f32 %v693, %v259
    %v695 = vadd.f32 %v694, 1e-05
    %v696 = vrsqrt.pop %v695
    %v697 = vmul.f32 %v686, %v696
    %v698 = vlaneseq
    %v699 = vshrl.u32 %v698, 7
    %v700 = vsub.s32 2, %v699
    %v701 = vrot.slane %v73, %v700
    %v702 = vmul.f32 %v697, %v701
    %v703 = vlaneseq
    %v704 = vshrl.u32 %v703, 7
    %v705 = vsub.s32 3, %v704
    %v706 = vrot.slane %v73, %v705
    %v707 = vadd.f32 %v702, %v706
    %s708 = scalar_lea.vmem [#allocation7], 192
    %v709 = vld [vmem:[%s708] sm:$0xf]
    %v710 = vld [vmem:[%s708 + $0x4] sm:$0xf]
    %v711 = vld [vmem:[%s708 + $0x8] sm:$0xf]
    %v712 = vld [vmem:[%s708 + $0xc] sm:$0xf]
    %v713 = vld [vmem:[%s708 + $0x10] sm:$0xf]
    %v714 = vld [vmem:[%s708 + $0x14] sm:$0xf]
    %v715 = vld [vmem:[%s708 + $0x18] sm:$0xf]
    %v716 = vld [vmem:[%s708 + $0x1c] sm:$0xf]
    %v717 = vld [vmem:[%s708 + $0x20] sm:$0xf]
    %v718 = vld [vmem:[%s708 + $0x24] sm:$0xf]
    %v719 = vld [vmem:[%s708 + $0x28] sm:$0xf]
    %v720 = vld [vmem:[%s708 + $0x2c] sm:$0xf]
    %v721 = vld [vmem:[%s708 + $0x30] sm:$0xf]
    %v722 = vld [vmem:[%s708 + $0x34] sm:$0xf]
    %v723 = vld [vmem:[%s708 + $0x38] sm:$0xf]
    %v724 = vld [vmem:[%s708 + $0x3c] sm:$0xf]
    %v725 = vpack.c.bf16 %v707, %v707
    %v726 = vlaneseq
    %v727 = vshrl.u32 %v726, 7
    %v728 = vsub.s32 4, %v727
    %v729 = vrot.slane %v73, %v728
    %v746 = vunpack.c.l.b16 %v709
    %v747 = vunpack.c.l.b16 %v710
    %v748 = vunpack.c.l.b16 %v711
    %v749 = vunpack.c.l.b16 %v712
    %v750 = vunpack.c.l.b16 %v713
    %v751 = vunpack.c.l.b16 %v714
    %v752 = vunpack.c.l.b16 %v715
    %v753 = vunpack.c.l.b16 %v716
    %v754 = vunpack.c.l.b16 %v717
    %v755 = vunpack.c.l.b16 %v718
    %v756 = vunpack.c.l.b16 %v719
    %v757 = vunpack.c.l.b16 %v720
    %v758 = vunpack.c.l.b16 %v721
    %v759 = vunpack.c.l.b16 %v722
    %v760 = vunpack.c.l.b16 %v723
    %v761 = vunpack.c.l.b16 %v724
    %v762 = vpack.c.b16 %v747, %v746
    %v763 = vpack.c.b16 %v749, %v748
    %v764 = vpack.c.b16 %v751, %v750
    %v765 = vpack.c.b16 %v753, %v752
    %v766 = vpack.c.b16 %v755, %v754
    %v767 = vpack.c.b16 %v757, %v756
    %v768 = vpack.c.b16 %v759, %v758
    %v769 = vpack.c.b16 %v761, %v760
    %778 = vmatprep.subr.bf16.mxu0 0
    %779 = vmatpush1.bf16.msra.mxu0 %v769
    %780 = vmatprep.subr.bf16.mxu0 0
    %781 = vmatpush1.bf16.msra.mxu0 %v768
    %782 = vmatprep.subr.bf16.mxu0 0
    %783 = vmatpush1.bf16.msra.mxu0 %v767
    %784 = vmatprep.subr.bf16.mxu0 0
    %785 = vmatpush1.bf16.msra.mxu0 %v766
    %786 = vmatprep.subr.bf16.mxu0 0
    %787 = vmatpush1.bf16.msra.mxu0 %v765
    %788 = vmatprep.subr.bf16.mxu0 0
    %789 = vmatpush1.bf16.msra.mxu0 %v764
    %790 = vmatprep.subr.bf16.mxu0 0
    %791 = vmatpush1.bf16.msra.mxu0 %v763
    %792 = vmatprep.subr.bf16.mxu0 0
    %793 = vmatpush1.bf16.msra.mxu0 %v762
    %794 = vmatprep.subr.bf16.mxu0 0
    %795 = vmatpush2.bf16.msra.mxu0 0
    %796 = vmatprep.subr.bf16.mxu0 0
    %797 = vmatpush2.bf16.msra.mxu0 0
    %798 = vmatprep.subr.bf16.mxu0 0
    %799 = vmatpush2.bf16.msra.mxu0 0
    %800 = vmatprep.subr.bf16.mxu0 0
    %801 = vmatpush2.bf16.msra.mxu0 0
    %802 = vmatprep.subr.bf16.mxu0 0
    %803 = vmatpush2.bf16.msra.mxu0 0
    %804 = vmatprep.subr.bf16.mxu0 0
    %805 = vmatpush2.bf16.msra.mxu0 0
    %806 = vmatprep.subr.bf16.mxu0 0
    %807 = vmatpush2.bf16.msra.mxu0 0
    %808 = vmatprep.subr.bf16.mxu0 0
    %809 = vmatpush2.bf16.msra.mxu0 0
    %810 = vmatprep.mubr.bf16.mxu0 0
    %811 = vmatmul.mubr.bf16.gmra.mxu0 %v725
    %v812 = vpop.f32.mrf.mxu0
    %v813 = vadd.f32 %v729, %v812
    %v814 = vpop.f32.mrf.mxu0
    %v815 = vpop.f32.mrf.mxu0
    %v816 = vpop.f32.mrf.mxu0
    %817 = vdwg.mxu0
    %vm818 = vcmp.ge.f32.partialorder %v813, 0.0
    %v819 = vmul.f32 %v813, 0.01
    %v820 = vsel %vm818, %v813, %v819
    %v821 = vrot.slane %v820, 4
    %v822 = vadd.f32 %v820, %v821
    %v823 = vrot.slane %v822, 2
    %v824 = vadd.f32 %v822, %v823
    %v825 = vrot.slane %v824, 1
    %v826 = vadd.f32 %v824, %v825
    %v827 = vmul.f32 %v826, %v259
    %v828 = vsub.f32 %v820, %v827
    %v829 = vmul.f32 %v828, %v828
    %v830 = vrot.slane %v829, 4
    %v831 = vadd.f32 %v829, %v830
    %v832 = vrot.slane %v831, 2
    %v833 = vadd.f32 %v831, %v832
    %v834 = vrot.slane %v833, 1
    %v835 = vadd.f32 %v833, %v834
    %v836 = vmul.f32 %v835, %v259
    %v837 = vadd.f32 %v836, 1e-05
    %v838 = vrsqrt.pop %v837
    %v839 = vmul.f32 %v828, %v838
    %v840 = vlaneseq
    %v841 = vshrl.u32 %v840, 7
    %v842 = vsub.s32 5, %v841
    %v843 = vrot.slane %v73, %v842
    %v844 = vmul.f32 %v839, %v843
    %v845 = vlaneseq
    %v846 = vshrl.u32 %v845, 7
    %v847 = vsub.s32 6, %v846
    %v848 = vrot.slane %v73, %v847
    %v849 = vadd.f32 %v844, %v848
    %v850 = vpack.c.bf16 %v849, %v849
    %s851 = scalar_lea.vmem [#allocation7], 256
    %v852 = vld [vmem:[%s851] sm:$0xf]
    %v853 = vld [vmem:[%s851 + $0x4] sm:$0xf]
    %v854 = vld [vmem:[%s851 + $0x8] sm:$0xf]
    %v855 = vld [vmem:[%s851 + $0xc] sm:$0xf]
    %v856 = vld [vmem:[%s851 + $0x10] sm:$0xf]
    %v857 = vld [vmem:[%s851 + $0x14] sm:$0xf]
    %v858 = vld [vmem:[%s851 + $0x18] sm:$0xf]
    %v859 = vld [vmem:[%s851 + $0x1c] sm:$0xf]
    %v860 = vld [vmem:[%s851 + $0x20] sm:$0xf]
    %v861 = vld [vmem:[%s851 + $0x24] sm:$0xf]
    %v862 = vld [vmem:[%s851 + $0x28] sm:$0xf]
    %v863 = vld [vmem:[%s851 + $0x2c] sm:$0xf]
    %v864 = vld [vmem:[%s851 + $0x30] sm:$0xf]
    %v865 = vld [vmem:[%s851 + $0x34] sm:$0xf]
    %v866 = vld [vmem:[%s851 + $0x38] sm:$0xf]
    %v867 = vld [vmem:[%s851 + $0x3c] sm:$0xf]
    %v868 = vlaneseq
    %v869 = vshrl.u32 %v868, 7
    %v870 = vsub.s32 7, %v869
    %v871 = vrot.slane %v73, %v870
    %v888 = vunpack.c.l.b16 %v852
    %v889 = vunpack.c.l.b16 %v853
    %v890 = vunpack.c.l.b16 %v854
    %v891 = vunpack.c.l.b16 %v855
    %v892 = vunpack.c.l.b16 %v856
    %v893 = vunpack.c.l.b16 %v857
    %v894 = vunpack.c.l.b16 %v858
    %v895 = vunpack.c.l.b16 %v859
    %v896 = vunpack.c.l.b16 %v860
    %v897 = vunpack.c.l.b16 %v861
    %v898 = vunpack.c.l.b16 %v862
    %v899 = vunpack.c.l.b16 %v863
    %v900 = vunpack.c.l.b16 %v864
    %v901 = vunpack.c.l.b16 %v865
    %v902 = vunpack.c.l.b16 %v866
    %v903 = vunpack.c.l.b16 %v867
    %v904 = vpack.c.b16 %v889, %v888
    %v905 = vpack.c.b16 %v891, %v890
    %v906 = vpack.c.b16 %v893, %v892
    %v907 = vpack.c.b16 %v895, %v894
    %v908 = vpack.c.b16 %v897, %v896
    %v909 = vpack.c.b16 %v899, %v898
    %v910 = vpack.c.b16 %v901, %v900
    %v911 = vpack.c.b16 %v903, %v902
    %920 = vmatprep.subr.bf16.mxu0 0
    %921 = vmatpush1.bf16.msra.mxu0 %v911
    %922 = vmatprep.subr.bf16.mxu0 0
    %923 = vmatpush1.bf16.msra.mxu0 %v910
    %924 = vmatprep.subr.bf16.mxu0 0
    %925 = vmatpush1.bf16.msra.mxu0 %v909
    %926 = vmatprep.subr.bf16.mxu0 0
    %927 = vmatpush1.bf16.msra.mxu0 %v908
    %928 = vmatprep.subr.bf16.mxu0 0
    %929 = vmatpush1.bf16.msra.mxu0 %v907
    %930 = vmatprep.subr.bf16.mxu0 0
    %931 = vmatpush1.bf16.msra.mxu0 %v906
    %932 = vmatprep.subr.bf16.mxu0 0
    %933 = vmatpush1.bf16.msra.mxu0 %v905
    %934 = vmatprep.subr.bf16.mxu0 0
    %935 = vmatpush1.bf16.msra.mxu0 %v904
    %936 = vmatprep.subr.bf16.mxu0 0
    %937 = vmatpush2.bf16.msra.mxu0 0
    %938 = vmatprep.subr.bf16.mxu0 0
    %939 = vmatpush2.bf16.msra.mxu0 0
    %940 = vmatprep.subr.bf16.mxu0 0
    %941 = vmatpush2.bf16.msra.mxu0 0
    %942 = vmatprep.subr.bf16.mxu0 0
    %943 = vmatpush2.bf16.msra.mxu0 0
    %944 = vmatprep.subr.bf16.mxu0 0
    %945 = vmatpush2.bf16.msra.mxu0 0
    %946 = vmatprep.subr.bf16.mxu0 0
    %947 = vmatpush2.bf16.msra.mxu0 0
    %948 = vmatprep.subr.bf16.mxu0 0
    %949 = vmatpush2.bf16.msra.mxu0 0
    %950 = vmatprep.subr.bf16.mxu0 0
    %951 = vmatpush2.bf16.msra.mxu0 0
    %952 = vmatprep.mubr.bf16.mxu0 0
    %953 = vmatmul.mubr.bf16.gmra.mxu0 %v850
    %v954 = vpop.f32.mrf.mxu0
    %v955 = vadd.f32 %v871, %v954
    %v956 = vpop.f32.mrf.mxu0
    %v957 = vpop.f32.mrf.mxu0
    %v958 = vpop.f32.mrf.mxu0
    %959 = vdwg.mxu0
    %960 = vmax.xlane.f32.xlu0 %v955
    %v961 = vpop.xlane.xlu0 %960
    %v962 = vsub.f32 %v955, %v961
    %v963 = vmul.f32 %v962, 1.442695
    %v964 = vpow.pop %v963
    %965 = vadd.xlane.f32.xlu0 %v964
    %v966 = vpop.xlane.xlu0 %965
    %v967 = vlog2.pop %v966
    %v968 = vmul.f32 %v967, 0.6931472
    %v969 = vsub.f32 %v962, %v968
    %970 = vst [vmem:[#allocation10] sm:$0xff] %v969
    // Predicated region
    $region34: #{image_classifier_forward.1} parent=1 // pred_check
      _
    $region35: #{image_classifier_forward.1} parent=1 // pred_check_branch
      %972 = sbr.rel (0) target = $region37
    $region36: #{image_classifier_forward.1} parent=1 // pred_region
      %s974 = ssub.s32 128, 128
      %975 = vsyncadd [#allocation4], %s974
      %s977 = sshll.u32 [#allocation10], 4
      %s978 = int_to_ptr.vmem [resolvable:$true] %s977
      %980 = dma.vmem_to_hbm [thread:$0]  %s978, 128, %s4, [#allocation4]
    $region37: #{image_classifier_forward.1} parent=1 // pred_fallthru
      _
    // Predicated region
    $region38: #{image_classifier_forward.1} parent=1 // pred_check
      _
    $region39: #{image_classifier_forward.1} parent=1 // pred_check_branch
      %982 = sbr.rel (0) target = $region41
    $region40: #{image_classifier_forward.1} parent=1 // pred_region
      %983 = dma.done [#allocation4], 128
    $region41: #{image_classifier_forward.1} parent=1 // pred_fallthru
      _
    %984 = vsyncpa [#allocation3], 1
    %985 = vsyncpa [#allocation6], 1
    %986 = vsyncpa [#allocation9], 1
    %987 = vsyncpa [#allocation4], 1

</llo_original>
